<compile_context>
chip_gen: v7x
topology: tpu7x:2x2x1
jax: 0.10.0
libtpu: 0.0.40
codegen_flags: <defaults>
</compile_context>

<pallas_src>
import functools
import math

import jax
import jax.numpy as jnp
from jax.experimental import pallas as pl
from jax.experimental.pallas import tpu as pltpu


# ----------------------------------------------------------------------------
# Glue: minimum-phase FIR derivation (plain JAX).
# TODO(synk): FFT / Hilbert transform have no Pallas TPU equivalent; kept in JAX.
# ----------------------------------------------------------------------------
def _hilbert_analytic(x, axis=-1):
    """Analytic signal via FFT (same convention as scipy/torch hilbert)."""
    n = x.shape[axis]
    xf = jnp.fft.fft(x, axis=axis)
    h = jnp.zeros((n,), dtype=xf.dtype)
    if n % 2 == 0:
        h = h.at[0].set(1.0).at[n // 2].set(1.0).at[1:n // 2].set(2.0)
    else:
        h = h.at[0].set(1.0).at[1:(n + 1) // 2].set(2.0)
    shape = [1] * x.ndim
    shape[axis] = n
    return jnp.fft.ifft(xf * h.reshape(shape), axis=axis)


def get_minimum_phase_fir(log_mag):
    # log_mag: [B, n_frames, n_fft//2 + 1]  ->  kernel: [B, n_frames, n_fft]
    full = jnp.concatenate(
        [log_mag, jnp.flip(log_mag, axis=-1)[..., 1:-1]], axis=-1)
    min_phase = -jnp.imag(_hilbert_analytic(full, axis=-1))
    freq_resp = jnp.exp(full + 1j * min_phase)
    kernel = jnp.real(jnp.fft.ifft(freq_resp, axis=-1))
    return kernel.astype(jnp.float32)


def hann_window(n, dtype=jnp.float32):
    # periodic hann window (torch.hann_window default)
    t = jnp.arange(n, dtype=jnp.float32)
    return (0.5 * (1.0 - jnp.cos(2.0 * math.pi * t / n))).astype(dtype)


def _round_up(x, m):
    return -(-x // m) * m


# ----------------------------------------------------------------------------
# Pallas kernel: per-frame (grouped) causal FIR convolution, frames on lanes.
#   out_t[j, f] = sum_r unf_t[j + r, f] * tapsF[r, f]
# ----------------------------------------------------------------------------
def _fir_kernel(unf_ref, kern_ref, out_ref, *, n_taps, hop_pad, hsub):
    # unf_ref  : (L_pad, F_TILE)    unf[s, f] = ex_pad[f*hop + s]
    # kern_ref : (n_taps, F_TILE)   flipped, windowed min-phase taps (frame-major)
    # out_ref  : (hop_pad, F_TILE)
    f_tile = out_ref.shape[-1]
    n_chunks = n_taps // 8            # n_taps padded to a multiple of 8

    def chunk_update(j0, r0, acc):
        # j0 and r0 are both multiples of 8 -> sublane-ALIGNED slab/chunk loads.
        base = j0 + r0
        slab = unf_ref[pl.ds(base, hsub + 8), :].astype(jnp.float32)   # (hsub+8, F)
        taps = kern_ref[pl.ds(r0, 8), :].astype(jnp.float32)           # (8, F) once/chunk
        for t in range(8):                          # static 8-tap unroll
            sig = slab[t:t + hsub, :]               # shifted REGISTER view (no re-load)
            acc = acc + sig * taps[t:t + 1, :]      # sublane-broadcast tap row
        return acc

    # Output sub-blocks bound the live register accumulator (<= ~8-16 vregs).
    for sb in range(hop_pad // hsub):
        j0 = sb * hsub
        acc = jnp.zeros((hsub, f_tile), jnp.float32)
        if n_chunks <= 8:
            # short tap loops: full static unroll (max scheduler visibility)
            for c in range(n_chunks):
                acc = chunk_update(j0, c * 8, acc)
        else:
            # production n_fft: rolled loop, modest unroll, bounded live ranges
            acc = jax.lax.fori_loop(
                0, n_chunks,
                lambda c, a: chunk_update(j0, pl.multiple_of(c * 8, 8), a),
                acc, unroll=2)
        out_ref[j0:j0 + hsub, :] = acc.astype(out_ref.dtype)


def ltv_minimum_phase_fir_filter(ex, log_mag, hop_length):
    """Equivalent of LTVMinimumPhaseFIRFilter(window='hann', conv_method='direct')."""
    assert ex.ndim == 2 and log_mag.ndim == 3
    B, T = ex.shape
    n_bins = log_mag.shape[-1]
    n_fft = 2 * (n_bins - 1)
    hop = int(hop_length)
    L = n_fft + hop - 1

    # Number of output frames, same formula as torch's unfold(1, L, hop).
    n_frames = (T + n_fft - 1 - L) // hop + 1
    assert 1 <= n_frames <= log_mag.shape[1], (n_frames, log_mag.shape)

    # ---- glue (plain JAX): min-phase taps, windowing, flip, frame-major transpose
    kernel = get_minimum_phase_fir(log_mag)[:, :n_frames]          # [B, F, n_fft]
    window = hann_window(n_fft).at[: n_fft // 2].set(1.0)          # first half := 1
    kernel = kernel * window[None, None, :]

    n_taps = _round_up(n_fft, 8)                                   # whole-vreg tap chunks
    tapsF = jnp.transpose(jnp.flip(kernel, axis=-1), (0, 2, 1))    # [B, n_fft, F]
    tapsF = jnp.pad(tapsF, ((0, 0), (0, n_taps - n_fft), (0, 0)))  # zero tap rows

    # ---- frame tiling (lane-dense frames; bounded per-step VMEM; >=2 tiles when possible)
    f_tile = 256 if n_frames >= 512 else 128     # 256 cap keeps v7x (64 MiB VMEM) safe
    f_pad = _round_up(n_frames, f_tile)
    n_tiles = f_pad // f_tile
    tapsF = jnp.pad(tapsF, ((0, 0), (0, 0), (0, f_pad - n_frames)))

    # ---- hop padding (whole-sublane output rows) and output sub-block size
    hop_pad = _round_up(hop, 8)
    max_hsub = 16 if f_tile >= 256 else 32
    hsub = 8
    for cand in (32, 16):
        if cand <= max_hsub and hop_pad % cand == 0:
            hsub = cand
            break

    # ---- frame-major (transposed) unfold: unf_t[b, s, f] = ex_pad[b, f*hop + s]
    L_pad = hop_pad + n_taps
    needed = (f_pad - 1) * hop + L_pad
    ex_pad = jnp.pad(ex, ((0, 0), (n_fft - 1, max(0, needed - (T + n_fft - 1)))))
    idx = (jnp.arange(L_pad, dtype=jnp.int32)[:, None]
           + jnp.arange(f_pad, dtype=jnp.int32)[None, :] * hop)
    unf_t = ex_pad[:, idx]                                          # [B, L_pad, f_pad]

    out_t = pl.pallas_call(
        functools.partial(_fir_kernel, n_taps=n_taps, hop_pad=hop_pad, hsub=hsub),
        out_shape=jax.ShapeDtypeStruct((B, hop_pad, f_pad), ex.dtype),
        grid_spec=pltpu.PrefetchScalarGridSpec(
            num_scalar_prefetch=0,
            grid=(B, n_tiles),
            in_specs=[
                pl.BlockSpec((None, L_pad, f_tile), lambda b, fi: (b, 0, fi)),
                pl.BlockSpec((None, n_taps, f_tile), lambda b, fi: (b, 0, fi)),
            ],
            out_specs=pl.BlockSpec((None, hop_pad, f_tile), lambda b, fi: (b, 0, fi)),
        ),
        compiler_params=pltpu.CompilerParams(
            dimension_semantics=("parallel", "parallel")),
    )(unf_t, tapsF)

    # back to time-major: [B, hop_pad, F_pad] -> [B, hop, F] -> [B, F, hop] -> [B, F*hop]
    out = jnp.transpose(out_t[:, :hop, :n_frames], (0, 2, 1))
    return out.reshape(B, n_frames * hop)


# ----------------------------------------------------------------------------
# Pure-JAX reference (mirrors the PyTorch forward) for a correctness check.
# ----------------------------------------------------------------------------
def _reference(ex, log_mag, hop_length):
    B, T = ex.shape
    kernel = get_minimum_phase_fir(log_mag)
    n_fft = kernel.shape[-1]
    window = hann_window(n_fft).at[: n_fft // 2].set(1.0)
    kernel = kernel * window
    n_frames = T // hop_length
    kernel = kernel[:, :n_frames]
    ex_pad = jnp.pad(ex, ((0, 0), (n_fft - 1, 0)))
    out = jnp.zeros((B, n_frames, hop_length), jnp.float32)
    for m in range(n_fft):
        seg = ex_pad[:, n_fft - 1 - m: n_fft - 1 - m + T]
        out = out + seg.reshape(B, n_frames, hop_length) * kernel[:, :, m:m + 1]
    return out.reshape(B, T)


if __name__ == "__main__":
    key = jax.random.PRNGKey(0)
    B, hop_length, n_fft, T = 2, 8, 16, 64
    n_frames = T // hop_length

    k1, k2 = jax.random.split(key)
    ex = jax.random.normal(k1, (B, T), dtype=jnp.float32)
    log_mag = 0.1 * jax.random.normal(
        k2, (B, n_frames, n_fft // 2 + 1), dtype=jnp.float32)

    out = ltv_minimum_phase_fir_filter(ex, log_mag, hop_length)
    out = jax.block_until_ready(out)

    ref = _reference(ex, log_mag, hop_length)
    assert out.shape == (B, T), out.shape
    max_err = float(jnp.max(jnp.abs(out - ref)))
    assert max_err < 1e-4, f"max abs error {max_err}"

    print("KERNEL_OK")
</pallas_src>

<mosaic_0001>
module attributes {stable_mosaic.version = 11 : i64} {
  func.func @_fir_kernel(%arg0: i32, %arg1: i32, %arg2: memref<1x24x128xf32, #tpu.memory_space<vmem>>, %arg3: memref<1x16x128xf32, #tpu.memory_space<vmem>>, %arg4: memref<1x8x128xf32, #tpu.memory_space<vmem>>) attributes {dimension_semantics = [#tpu.dimension_semantics<parallel>, #tpu.dimension_semantics<parallel>], iteration_bounds = array<i64: 2, 1>, scalar_prefetch = 0 : i64, scratch_operands = 0 : i64, tpu.core_type = #tpu.core_type<tc>, window_params = [{transform_indices = @transform_0, window_bounds = array<i64: 1, 24, 128>}, {transform_indices = @transform_1, window_bounds = array<i64: 1, 16, 128>}, {transform_indices = @transform_2, window_bounds = array<i64: 1, 8, 128>}]} {
    %cst = arith.constant 0.000000e+00 : f32
    %0 = vector.broadcast %cst : f32 to vector<8x128xf32>
    %c0 = arith.constant 0 : index
    %c0_0 = arith.constant 0 : index
    %c0_1 = arith.constant 0 : index
    %1 = vector.load %arg2[%c0, %c0_0, %c0_1] : memref<1x24x128xf32, #tpu.memory_space<vmem>>, vector<1x16x128xf32>
    %2 = vector.shape_cast %1 : vector<1x16x128xf32> to vector<16x128xf32>
    %c0_2 = arith.constant 0 : index
    %c0_3 = arith.constant 0 : index
    %c0_4 = arith.constant 0 : index
    %3 = vector.load %arg3[%c0_2, %c0_3, %c0_4] : memref<1x16x128xf32, #tpu.memory_space<vmem>>, vector<1x8x128xf32>
    %4 = vector.shape_cast %3 : vector<1x8x128xf32> to vector<8x128xf32>
    %5 = vector.extract_strided_slice %2 {offsets = [0, 0], sizes = [8, 128], strides = [1, 1]} : vector<16x128xf32> to vector<8x128xf32>
    %6 = vector.extract_strided_slice %4 {offsets = [0, 0], sizes = [1, 128], strides = [1, 1]} : vector<8x128xf32> to vector<1x128xf32>
    %7 = vector.broadcast %6 : vector<1x128xf32> to vector<8x128xf32>
    %8 = arith.mulf %5, %7 : vector<8x128xf32>
    %9 = arith.addf %0, %8 : vector<8x128xf32>
    %10 = vector.extract_strided_slice %2 {offsets = [1, 0], sizes = [8, 128], strides = [1, 1]} : vector<16x128xf32> to vector<8x128xf32>
    %11 = vector.extract_strided_slice %4 {offsets = [1, 0], sizes = [1, 128], strides = [1, 1]} : vector<8x128xf32> to vector<1x128xf32>
    %12 = vector.broadcast %11 : vector<1x128xf32> to vector<8x128xf32>
    %13 = arith.mulf %10, %12 : vector<8x128xf32>
    %14 = arith.addf %9, %13 : vector<8x128xf32>
    %15 = vector.extract_strided_slice %2 {offsets = [2, 0], sizes = [8, 128], strides = [1, 1]} : vector<16x128xf32> to vector<8x128xf32>
    %16 = vector.extract_strided_slice %4 {offsets = [2, 0], sizes = [1, 128], strides = [1, 1]} : vector<8x128xf32> to vector<1x128xf32>
    %17 = vector.broadcast %16 : vector<1x128xf32> to vector<8x128xf32>
    %18 = arith.mulf %15, %17 : vector<8x128xf32>
    %19 = arith.addf %14, %18 : vector<8x128xf32>
    %20 = vector.extract_strided_slice %2 {offsets = [3, 0], sizes = [8, 128], strides = [1, 1]} : vector<16x128xf32> to vector<8x128xf32>
    %21 = vector.extract_strided_slice %4 {offsets = [3, 0], sizes = [1, 128], strides = [1, 1]} : vector<8x128xf32> to vector<1x128xf32>
    %22 = vector.broadcast %21 : vector<1x128xf32> to vector<8x128xf32>
    %23 = arith.mulf %20, %22 : vector<8x128xf32>
    %24 = arith.addf %19, %23 : vector<8x128xf32>
    %25 = vector.extract_strided_slice %2 {offsets = [4, 0], sizes = [8, 128], strides = [1, 1]} : vector<16x128xf32> to vector<8x128xf32>
    %26 = vector.extract_strided_slice %4 {offsets = [4, 0], sizes = [1, 128], strides = [1, 1]} : vector<8x128xf32> to vector<1x128xf32>
    %27 = vector.broadcast %26 : vector<1x128xf32> to vector<8x128xf32>
    %28 = arith.mulf %25, %27 : vector<8x128xf32>
    %29 = arith.addf %24, %28 : vector<8x128xf32>
    %30 = vector.extract_strided_slice %2 {offsets = [5, 0], sizes = [8, 128], strides = [1, 1]} : vector<16x128xf32> to vector<8x128xf32>
    %31 = vector.extract_strided_slice %4 {offsets = [5, 0], sizes = [1, 128], strides = [1, 1]} : vector<8x128xf32> to vector<1x128xf32>
    %32 = vector.broadcast %31 : vector<1x128xf32> to vector<8x128xf32>
    %33 = arith.mulf %30, %32 : vector<8x128xf32>
    %34 = arith.addf %29, %33 : vector<8x128xf32>
    %35 = vector.extract_strided_slice %2 {offsets = [6, 0], sizes = [8, 128], strides = [1, 1]} : vector<16x128xf32> to vector<8x128xf32>
    %36 = vector.extract_strided_slice %4 {offsets = [6, 0], sizes = [1, 128], strides = [1, 1]} : vector<8x128xf32> to vector<1x128xf32>
    %37 = vector.broadcast %36 : vector<1x128xf32> to vector<8x128xf32>
    %38 = arith.mulf %35, %37 : vector<8x128xf32>
    %39 = arith.addf %34, %38 : vector<8x128xf32>
    %40 = vector.extract_strided_slice %2 {offsets = [7, 0], sizes = [8, 128], strides = [1, 1]} : vector<16x128xf32> to vector<8x128xf32>
    %41 = vector.extract_strided_slice %4 {offsets = [7, 0], sizes = [1, 128], strides = [1, 1]} : vector<8x128xf32> to vector<1x128xf32>
    %42 = vector.broadcast %41 : vector<1x128xf32> to vector<8x128xf32>
    %43 = arith.mulf %40, %42 : vector<8x128xf32>
    %44 = arith.addf %39, %43 : vector<8x128xf32>
    %c0_5 = arith.constant 0 : index
    %c8 = arith.constant 8 : index
    %c0_6 = arith.constant 0 : index
    %45 = vector.load %arg2[%c0_5, %c8, %c0_6] : memref<1x24x128xf32, #tpu.memory_space<vmem>>, vector<1x16x128xf32>
    %46 = vector.shape_cast %45 : vector<1x16x128xf32> to vector<16x128xf32>
    %c0_7 = arith.constant 0 : index
    %c8_8 = arith.constant 8 : index
    %c0_9 = arith.constant 0 : index
    %47 = vector.load %arg3[%c0_7, %c8_8, %c0_9] : memref<1x16x128xf32, #tpu.memory_space<vmem>>, vector<1x8x128xf32>
    %48 = vector.shape_cast %47 : vector<1x8x128xf32> to vector<8x128xf32>
    %49 = vector.extract_strided_slice %46 {offsets = [0, 0], sizes = [8, 128], strides = [1, 1]} : vector<16x128xf32> to vector<8x128xf32>
    %50 = vector.extract_strided_slice %48 {offsets = [0, 0], sizes = [1, 128], strides = [1, 1]} : vector<8x128xf32> to vector<1x128xf32>
    %51 = vector.broadcast %50 : vector<1x128xf32> to vector<8x128xf32>
    %52 = arith.mulf %49, %51 : vector<8x128xf32>
    %53 = arith.addf %44, %52 : vector<8x128xf32>
    %54 = vector.extract_strided_slice %46 {offsets = [1, 0], sizes = [8, 128], strides = [1, 1]} : vector<16x128xf32> to vector<8x128xf32>
    %55 = vector.extract_strided_slice %48 {offsets = [1, 0], sizes = [1, 128], strides = [1, 1]} : vector<8x128xf32> to vector<1x128xf32>
    %56 = vector.broadcast %55 : vector<1x128xf32> to vector<8x128xf32>
    %57 = arith.mulf %54, %56 : vector<8x128xf32>
    %58 = arith.addf %53, %57 : vector<8x128xf32>
    %59 = vector.extract_strided_slice %46 {offsets = [2, 0], sizes = [8, 128], strides = [1, 1]} : vector<16x128xf32> to vector<8x128xf32>
    %60 = vector.extract_strided_slice %48 {offsets = [2, 0], sizes = [1, 128], strides = [1, 1]} : vector<8x128xf32> to vector<1x128xf32>
    %61 = vector.broadcast %60 : vector<1x128xf32> to vector<8x128xf32>
    %62 = arith.mulf %59, %61 : vector<8x128xf32>
    %63 = arith.addf %58, %62 : vector<8x128xf32>
    %64 = vector.extract_strided_slice %46 {offsets = [3, 0], sizes = [8, 128], strides = [1, 1]} : vector<16x128xf32> to vector<8x128xf32>
    %65 = vector.extract_strided_slice %48 {offsets = [3, 0], sizes = [1, 128], strides = [1, 1]} : vector<8x128xf32> to vector<1x128xf32>
    %66 = vector.broadcast %65 : vector<1x128xf32> to vector<8x128xf32>
    %67 = arith.mulf %64, %66 : vector<8x128xf32>
    %68 = arith.addf %63, %67 : vector<8x128xf32>
    %69 = vector.extract_strided_slice %46 {offsets = [4, 0], sizes = [8, 128], strides = [1, 1]} : vector<16x128xf32> to vector<8x128xf32>
    %70 = vector.extract_strided_slice %48 {offsets = [4, 0], sizes = [1, 128], strides = [1, 1]} : vector<8x128xf32> to vector<1x128xf32>
    %71 = vector.broadcast %70 : vector<1x128xf32> to vector<8x128xf32>
    %72 = arith.mulf %69, %71 : vector<8x128xf32>
    %73 = arith.addf %68, %72 : vector<8x128xf32>
    %74 = vector.extract_strided_slice %46 {offsets = [5, 0], sizes = [8, 128], strides = [1, 1]} : vector<16x128xf32> to vector<8x128xf32>
    %75 = vector.extract_strided_slice %48 {offsets = [5, 0], sizes = [1, 128], strides = [1, 1]} : vector<8x128xf32> to vector<1x128xf32>
    %76 = vector.broadcast %75 : vector<1x128xf32> to vector<8x128xf32>
    %77 = arith.mulf %74, %76 : vector<8x128xf32>
    %78 = arith.addf %73, %77 : vector<8x128xf32>
    %79 = vector.extract_strided_slice %46 {offsets = [6, 0], sizes = [8, 128], strides = [1, 1]} : vector<16x128xf32> to vector<8x128xf32>
    %80 = vector.extract_strided_slice %48 {offsets = [6, 0], sizes = [1, 128], strides = [1, 1]} : vector<8x128xf32> to vector<1x128xf32>
    %81 = vector.broadcast %80 : vector<1x128xf32> to vector<8x128xf32>
    %82 = arith.mulf %79, %81 : vector<8x128xf32>
    %83 = arith.addf %78, %82 : vector<8x128xf32>
    %84 = vector.extract_strided_slice %46 {offsets = [7, 0], sizes = [8, 128], strides = [1, 1]} : vector<16x128xf32> to vector<8x128xf32>
    %85 = vector.extract_strided_slice %48 {offsets = [7, 0], sizes = [1, 128], strides = [1, 1]} : vector<8x128xf32> to vector<1x128xf32>
    %86 = vector.broadcast %85 : vector<1x128xf32> to vector<8x128xf32>
    %87 = arith.mulf %84, %86 : vector<8x128xf32>
    %88 = arith.addf %83, %87 : vector<8x128xf32>
    %c0_10 = arith.constant 0 : index
    %c0_11 = arith.constant 0 : index
    %c0_12 = arith.constant 0 : index
    %89 = vector.load %arg4[%c0_10, %c0_11, %c0_12] : memref<1x8x128xf32, #tpu.memory_space<vmem>>, vector<1x8x128xf32>
    %90 = vector.shape_cast %89 : vector<1x8x128xf32> to vector<8x128xf32>
    %91 = vector.shape_cast %88 : vector<8x128xf32> to vector<1x8x128xf32>
    tpu.vector_store %arg4[%c0_10, %c0_11, %c0_12], %91 {strides = array<i32>} : memref<1x8x128xf32, #tpu.memory_space<vmem>>, vector<1x8x128xf32>,
    return
  }
  func.func @transform_0(%arg0: i32, %arg1: i32) -> (i32, i32, i32) {
    %c0_i32 = arith.constant 0 : i32
    %c0_i32_0 = arith.constant 0 : i32
    return %arg0, %c0_i32, %arg1 : i32, i32, i32
  }
  func.func @transform_1(%arg0: i32, %arg1: i32) -> (i32, i32, i32) {
    %c0_i32 = arith.constant 0 : i32
    %c0_i32_0 = arith.constant 0 : i32
    return %arg0, %c0_i32, %arg1 : i32, i32, i32
  }
  func.func @transform_2(%arg0: i32, %arg1: i32) -> (i32, i32, i32) {
    %c0_i32 = arith.constant 0 : i32
    %c0_i32_0 = arith.constant 0 : i32
    return %arg0, %c0_i32, %arg1 : i32, i32, i32
  }
}

</mosaic_0001>

<llo_original>
// kernel: tpu_custom_call.1
$region0: #{tpu_custom_call.1}
  #allocation0 [shape = 'u32[]', space=smem, size = 0x4, offset = 0x4, fixed_abs, tag = 'smem constant byte address 0x4 - core index']
  #allocation1 [shape = 'u32[144,128]{1,0:T(1,128)}', space=vmem, size = 0x12000, scoped, tag = 'internal scratch']
  %s0 = inlined_call_operand.hbm [shape: f32[2,24,128], index: 0, kind: input, shape index: {}]
  %s1 = inlined_call_operand.hbm [shape: f32[2,16,128], index: 1, kind: input, shape index: {}]
  %s2 = inlined_call_operand.hbm [shape: f32[2,8,128], index: 2, kind: output, shape index: {}]
  %s3 = sld [smem:[#allocation0]]
  $region49: #{tpu_custom_call.1} parent=0
    _
  %s5 = ssub.s32 1, %s3
  %s6 = scalar_select 0, %s5, %s3
  $region1: #{tpu_custom_call.1} parent=0
    #allocation2 [shape = 'u8[24576]{0}', space=vmem, size = 0x6000, scoped, tag = 'input window, operand 0']
    #allocation3 [shape = 's32[2]{0}', space=sflag, size = 0x8, scoped, tag = 'scoped memory for tpu_custom_call.1']
    #allocation4 [shape = 's32[2]{0}', space=sflag, size = 0x8, scoped, tag = 'scoped memory for tpu_custom_call.1']
    #allocation5 [shape = 'u8[16384]{0}', space=vmem, size = 0x4000, scoped, tag = 'input window, operand 1']
    #allocation6 [shape = 's32[2]{0}', space=sflag, size = 0x8, scoped, tag = 'scoped memory for tpu_custom_call.1']
    #allocation7 [shape = 'u8[8192]{0}', space=vmem, size = 0x2000, scoped, tag = 'output window, operand 0']
    %7 = vsyncpa [#allocation3], 0
    %s8 = scalar_lea.sflag [#allocation3], 1
    %9 = vsyncpa %s8, 0
    %10 = vsyncpa [#allocation6], 0
    %s11 = scalar_lea.sflag [#allocation6], 1
    %12 = vsyncpa %s11, 0
    %13 = vsyncpa [#allocation4], 0
    %s14 = scalar_lea.sflag [#allocation4], 1
    %15 = vsyncpa %s14, 0
    loop: start=0, step=1, limit=4
    $region2: #{tpu_custom_call.1} parent=1 // loop_pre_header
      _
    $region3: #{tpu_custom_call.1} parent=1 // loop_header
      %s17 = sphi 0, %s21
      %p18 = scmp.ge.s32.totalorder %s17, 4
      %s24 = sphi 0, %s36
      %s25 = sphi 0, %s32
      %s26 = sphi 0, %s24
      %s27 = sphi 0, %s25
      %s28 = sphi 0, %s26
      %s29 = sphi 0, %s27
      %s41 = sphi 0, %s43
      %s44 = sphi 0, %s41
      %s45 = sphi 0, %s44
      %s61 = sphi 0, %s45
      %s69 = sphi 0, %s71
      %s72 = sphi 0, %s69
      %s73 = sphi 0, %s72
      %s89 = sphi 0, %s73
      %s97 = sphi 0, %s99
      %s100 = sphi 0, %s97
      %s101 = sphi 0, %s100
      %s117 = sphi 0, %s101
    $region4: #{tpu_custom_call.1} parent=1 // loop_header_branch
      %20 = sbr.rel (%p18) target = $region8
    $region5: #{tpu_custom_call.1} parent=1 // loop_body
      %s22 = ssub.s32 %s17, 1
      %s23 = ssub.s32 %s17, 2
      %s30 = sadd.s32 1, %s25
      %p31 = scmp.ge.s32.totalorder %s30, 1
      %s32 = scalar_select %p31, 0, %s30
      %s33 = sadd.s32 1, %s24
      %s34 = scalar_select %p31, %s33, %s24
      %p35 = scmp.ge.s32.totalorder %s34, 2
      %s36 = scalar_select %p35, 0, %s34
      %s37 = ssub.s32 %s24, %s36
      %s38 = ssub.s32 %s25, %s32
      %s39 = sor.u32 %s37, %s38
      %p40 = scmp.eq.s32.totalorder %s39, 0
      %s42 = sadd.s32 %s41, 1
      %s43 = scalar_select %p40, %s41, %s42
      %p46 = pneg %p40
      %p47 = scmp.eq.s32.totalorder %s17, 1
      %p48 = por %p46, %p47
      %p49 = scmp.ne.s32.totalorder %s41, %s44
      %p50 = scmp.eq.s32.totalorder %s17, 0
      %p51 = por %p49, %p50
      %p52 = scmp.ne.s32.totalorder %s41, %s44
      %p53 = scmp.eq.s32.totalorder %s22, 1
      %p54 = por %p52, %p53
      %p55 = scmp.ne.s32.totalorder %s44, %s45
      %p56 = scmp.eq.s32.totalorder %s22, 0
      %p57 = por %p55, %p56
      %p58 = scmp.ne.s32.totalorder %s44, %s45
      %p59 = scmp.eq.s32.totalorder %s23, 1
      %p60 = por %p58, %p59
      %p62 = scmp.ne.s32.totalorder %s45, %s61
      %p63 = scmp.eq.s32.totalorder %s23, 0
      %p64 = por %p62, %p63
      %s65 = ssub.s32 %s24, %s36
      %s66 = ssub.s32 %s25, %s32
      %s67 = sor.u32 %s65, %s66
      %p68 = scmp.eq.s32.totalorder %s67, 0
      %s70 = sadd.s32 %s69, 1
      %s71 = scalar_select %p68, %s69, %s70
      %p74 = pneg %p68
      %p75 = scmp.eq.s32.totalorder %s17, 1
      %p76 = por %p74, %p75
      %p77 = scmp.ne.s32.totalorder %s69, %s72
      %p78 = scmp.eq.s32.totalorder %s17, 0
      %p79 = por %p77, %p78
      %p80 = scmp.ne.s32.totalorder %s69, %s72
      %p81 = scmp.eq.s32.totalorder %s22, 1
      %p82 = por %p80, %p81
      %p83 = scmp.ne.s32.totalorder %s72, %s73
      %p84 = scmp.eq.s32.totalorder %s22, 0
      %p85 = por %p83, %p84
      %p86 = scmp.ne.s32.totalorder %s72, %s73
      %p87 = scmp.eq.s32.totalorder %s23, 1
      %p88 = por %p86, %p87
      %p90 = scmp.ne.s32.totalorder %s73, %s89
      %p91 = scmp.eq.s32.totalorder %s23, 0
      %p92 = por %p90, %p91
      %s93 = ssub.s32 %s24, %s36
      %s94 = ssub.s32 %s25, %s32
      %s95 = sor.u32 %s93, %s94
      %p96 = scmp.eq.s32.totalorder %s95, 0
      %s98 = sadd.s32 %s97, 1
      %s99 = scalar_select %p96, %s97, %s98
      %p102 = pneg %p96
      %p103 = scmp.eq.s32.totalorder %s17, 1
      %p104 = por %p102, %p103
      %p105 = scmp.ne.s32.totalorder %s97, %s100
      %p106 = scmp.eq.s32.totalorder %s17, 0
      %p107 = por %p105, %p106
      %p108 = scmp.ne.s32.totalorder %s97, %s100
      %p109 = scmp.eq.s32.totalorder %s22, 1
      %p110 = por %p108, %p109
      %p111 = scmp.ne.s32.totalorder %s100, %s101
      %p112 = scmp.eq.s32.totalorder %s22, 0
      %p113 = por %p111, %p112
      %p114 = scmp.ne.s32.totalorder %s100, %s101
      %p115 = scmp.eq.s32.totalorder %s23, 1
      %p116 = por %p114, %p115
      %p118 = scmp.ne.s32.totalorder %s101, %s117
      %p119 = scmp.eq.s32.totalorder %s23, 0
      %p120 = por %p118, %p119
      %p121 = scmp.le.s32.totalorder 1, %s17
      %p122 = scmp.lt.s32.totalorder %s17, 3
      %p123 = pnand %p121, %p122
      %p124 = pneg %p123
      // Predicated region
      $region9: #{tpu_custom_call.1} parent=5 // pred_check
        _
      $region10: #{tpu_custom_call.1} parent=5 // pred_check_branch
        %126 = sbr.rel (%p123) target = $region12
      $region11: #{tpu_custom_call.1} parent=5 // pred_region
        %s127 = ssub.s32 %s17, 1
      $region12: #{tpu_custom_call.1} parent=5 // pred_fallthru
        _
      %p128 = scmp.lt.s32.totalorder %s17, 2
      // Predicated region
      $region13: #{tpu_custom_call.1} parent=5 // pred_check
        %p129 = pneg %p128
      $region14: #{tpu_custom_call.1} parent=5 // pred_check_branch
        %131 = sbr.rel (%p129) target = $region16
      $region15: #{tpu_custom_call.1} parent=5 // pred_region
        // Predicated region
        $region17: #{tpu_custom_call.1} parent=15 // pred_check
          %p132 = pneg %p51
        $region18: #{tpu_custom_call.1} parent=15 // pred_check_branch
          %134 = sbr.rel (%p132) target = $region20
        $region19: #{tpu_custom_call.1} parent=15 // pred_region
          %s135 = sand.u32 %s41, 1
          %s136 = scalar_lea.sflag [#allocation3], %s135
          %s137 = sand.u32 %s41, 1
          %s138 = smul.addr %s137, 24
          %s139 = scalar_lea.vmem [#allocation2], %s138
          %s141 = ssub.s32 384, 384
          %142 = vsyncadd %s136, %s141
          %s143 = smul.addr %s24, 3
          %s144 = sadd.s32 %s25, %s143
          %s145 = smul.addr %s144, 128
          %s146 = scalar_lea.hbm %s0, %s145
          %s147 = sshll.u32 %s139, 4
          %s148 = int_to_ptr.vmem [resolvable:$true] %s147
          %153 = dma.hbm_to_vmem [thread:$0]  %s146, 384, %s148, %s136, 128, 128, 8
        $region20: #{tpu_custom_call.1} parent=15 // pred_fallthru
          _
        // Predicated region
        $region21: #{tpu_custom_call.1} parent=15 // pred_check
          %p154 = pneg %p79
        $region22: #{tpu_custom_call.1} parent=15 // pred_check_branch
          %156 = sbr.rel (%p154) target = $region24
        $region23: #{tpu_custom_call.1} parent=15 // pred_region
          %s157 = sand.u32 %s69, 1
          %s158 = scalar_lea.sflag [#allocation6], %s157
          %s159 = sand.u32 %s69, 1
          %s160 = smul.addr %s159, 16
          %s161 = scalar_lea.vmem [#allocation5], %s160
          %s163 = ssub.s32 256, 256
          %164 = vsyncadd %s158, %s163
          %s165 = smul.addr %s24, 2
          %s166 = sadd.s32 %s25, %s165
          %s167 = smul.addr %s166, 128
          %s168 = scalar_lea.hbm %s1, %s167
          %s169 = sshll.u32 %s161, 4
          %s170 = int_to_ptr.vmem [resolvable:$true] %s169
          %175 = dma.hbm_to_vmem [thread:$0]  %s168, 256, %s170, %s158, 128, 128, 8
        $region24: #{tpu_custom_call.1} parent=15 // pred_fallthru
          _
      $region16: #{tpu_custom_call.1} parent=5 // pred_fallthru
        _
      %p176 = scmp.le.s32.totalorder 1, %s17
      %p177 = scmp.lt.s32.totalorder %s17, 3
      %p178 = pnand %p176, %p177
      %p179 = pneg %p178
      // Predicated region
      $region25: #{tpu_custom_call.1} parent=5 // pred_check
        _
      $region26: #{tpu_custom_call.1} parent=5 // pred_check_branch
        %181 = sbr.rel (%p178) target = $region28
      $region27: #{tpu_custom_call.1} parent=5 // pred_region
        %s182 = ssub.s32 %s17, 1
        %s183 = sand.u32 %s44, 1
        %s184 = scalar_lea.sflag [#allocation3], %s183
        %s185 = sand.u32 %s44, 1
        %s186 = smul.addr %s185, 24
        %s187 = scalar_lea.vmem [#allocation2], %s186
        // Predicated region
        $region29: #{tpu_custom_call.1} parent=27 // pred_check
          %p188 = pneg %p57
        $region30: #{tpu_custom_call.1} parent=27 // pred_check_branch
          %190 = sbr.rel (%p188) target = $region32
        $region31: #{tpu_custom_call.1} parent=27 // pred_region
          %191 = dma.done %s184, 384
        $region32: #{tpu_custom_call.1} parent=27 // pred_fallthru
          _
        %s192 = sand.u32 %s72, 1
        %s193 = scalar_lea.sflag [#allocation6], %s192
        %s194 = sand.u32 %s72, 1
        %s195 = smul.addr %s194, 16
        %s196 = scalar_lea.vmem [#allocation5], %s195
        // Predicated region
        $region33: #{tpu_custom_call.1} parent=27 // pred_check
          %p197 = pneg %p85
        $region34: #{tpu_custom_call.1} parent=27 // pred_check_branch
          %199 = sbr.rel (%p197) target = $region36
        $region35: #{tpu_custom_call.1} parent=27 // pred_region
          %200 = dma.done %s193, 256
        $region36: #{tpu_custom_call.1} parent=27 // pred_fallthru
          _
        %s201 = sand.u32 %s44, 1
        %s202 = scalar_lea.sflag [#allocation3], %s201
        %s203 = sand.u32 %s44, 1
        %s204 = smul.addr %s203, 24
        %s205 = scalar_lea.vmem [#allocation2], %s204
        %p206 = pneg %p57
        %p207 = pneg %p54
        %s208 = sand.u32 %s72, 1
        %s209 = scalar_lea.sflag [#allocation6], %s208
        %s210 = sand.u32 %s72, 1
        %s211 = smul.addr %s210, 16
        %s212 = scalar_lea.vmem [#allocation5], %s211
        %p213 = pneg %p85
        %p214 = pneg %p82
        %p215 = pneg %p113
        %p216 = pneg %p110
        %s217 = sand.u32 %s100, 1
        %s218 = scalar_lea.sflag [#allocation4], %s217
        %s219 = sand.u32 %s100, 1
        %s220 = smul.addr %s219, 8
        %s221 = scalar_lea.vmem [#allocation7], %s220
        %v222 = vld [vmem:[%s187] sm:$0xff]
        %v223 = vld [vmem:[%s187 + $0x8] sm:$0xff]
        %v224 = vld [vmem:[%s196] sm:$0xff]
        %v225 = vlaneseq
        %v226 = vshrl.u32 %v225, 7
        %v227 = vsub.s32 0, %v226
        %v228 = vrot.slane %v224, %v227
        %v229 = vmul.f32 %v222, %v228
        %v230 = vadd.f32 %v229, 0.0
        %v231 = vlaneseq
        %v232 = vshrl.u32 %v231, 7
        %v233 = vsub.s32 1, %v232
        %v234 = vrot.slane %v224, %v233
        %v235 = vmul.f32 %v222, %v234
        %v236 = vmul.f32 %v223, %v234
        %vm239 = vcmask 1046528
        %v240 = vrot.slane %v235, 1
        %v241 = vrot.slane %v236, 1
        %v242 = vsel %vm239, %v240, %v241
        %v244 = vadd.f32 %v230, %v242
        %v245 = vlaneseq
        %v246 = vshrl.u32 %v245, 7
        %v247 = vsub.s32 2, %v246
        %v248 = vrot.slane %v224, %v247
        %v249 = vmul.f32 %v222, %v248
        %v250 = vmul.f32 %v223, %v248
        %vm253 = vcmask 1045504
        %v254 = vrot.slane %v249, 2
        %v255 = vrot.slane %v250, 2
        %v256 = vsel %vm253, %v254, %v255
        %v258 = vadd.f32 %v244, %v256
        %v259 = vlaneseq
        %v260 = vshrl.u32 %v259, 7
        %v261 = vsub.s32 3, %v260
        %v262 = vrot.slane %v224, %v261
        %v263 = vmul.f32 %v222, %v262
        %v264 = vmul.f32 %v223, %v262
        %vm267 = vcmask 1044480
        %v268 = vrot.slane %v263, 3
        %v269 = vrot.slane %v264, 3
        %v270 = vsel %vm267, %v268, %v269
        %v272 = vadd.f32 %v258, %v270
        %v273 = vlaneseq
        %v274 = vshrl.u32 %v273, 7
        %v275 = vsub.s32 4, %v274
        %v276 = vrot.slane %v224, %v275
        %v277 = vmul.f32 %v222, %v276
        %v278 = vmul.f32 %v223, %v276
        %vm281 = vcmask 1043456
        %v282 = vrot.slane %v277, 4
        %v283 = vrot.slane %v278, 4
        %v284 = vsel %vm281, %v282, %v283
        %v286 = vadd.f32 %v272, %v284
        %v287 = vlaneseq
        %v288 = vshrl.u32 %v287, 7
        %v289 = vsub.s32 5, %v288
        %v290 = vrot.slane %v224, %v289
        %v291 = vmul.f32 %v222, %v290
        %v292 = vmul.f32 %v223, %v290
        %vm295 = vcmask 1042432
        %v296 = vrot.slane %v291, 5
        %v297 = vrot.slane %v292, 5
        %v298 = vsel %vm295, %v296, %v297
        %v300 = vadd.f32 %v286, %v298
        %v301 = vlaneseq
        %v302 = vshrl.u32 %v301, 7
        %v303 = vsub.s32 6, %v302
        %v304 = vrot.slane %v224, %v303
        %v305 = vmul.f32 %v222, %v304
        %v306 = vmul.f32 %v223, %v304
        %vm309 = vcmask 1041408
        %v310 = vrot.slane %v305, 6
        %v311 = vrot.slane %v306, 6
        %v312 = vsel %vm309, %v310, %v311
        %v314 = vadd.f32 %v300, %v312
        %v315 = vlaneseq
        %v316 = vshrl.u32 %v315, 7
        %v317 = vsub.s32 7, %v316
        %v318 = vrot.slane %v224, %v317
        %v319 = vmul.f32 %v222, %v318
        %v320 = vmul.f32 %v223, %v318
        %vm323 = vcmask 1040384
        %v324 = vrot.slane %v319, 7
        %v325 = vrot.slane %v320, 7
        %v326 = vsel %vm323, %v324, %v325
        %v328 = vadd.f32 %v314, %v326
        %v329 = vld [vmem:[%s187 + $0x8] sm:$0xff]
        %v330 = vld [vmem:[%s187 + $0x10] sm:$0xff]
        %v331 = vld [vmem:[%s196 + $0x8] sm:$0xff]
        %v332 = vlaneseq
        %v333 = vshrl.u32 %v332, 7
        %v334 = vsub.s32 0, %v333
        %v335 = vrot.slane %v331, %v334
        %v336 = vmul.f32 %v329, %v335
        %v337 = vadd.f32 %v328, %v336
        %v338 = vlaneseq
        %v339 = vshrl.u32 %v338, 7
        %v340 = vsub.s32 1, %v339
        %v341 = vrot.slane %v331, %v340
        %v342 = vmul.f32 %v329, %v341
        %v343 = vmul.f32 %v330, %v341
        %v346 = vrot.slane %v342, 1
        %v347 = vrot.slane %v343, 1
        %v348 = vsel %vm239, %v346, %v347
        %v350 = vadd.f32 %v337, %v348
        %v351 = vlaneseq
        %v352 = vshrl.u32 %v351, 7
        %v353 = vsub.s32 2, %v352
        %v354 = vrot.slane %v331, %v353
        %v355 = vmul.f32 %v329, %v354
        %v356 = vmul.f32 %v330, %v354
        %v359 = vrot.slane %v355, 2
        %v360 = vrot.slane %v356, 2
        %v361 = vsel %vm253, %v359, %v360
        %v363 = vadd.f32 %v350, %v361
        %v364 = vlaneseq
        %v365 = vshrl.u32 %v364, 7
        %v366 = vsub.s32 3, %v365
        %v367 = vrot.slane %v331, %v366
        %v368 = vmul.f32 %v329, %v367
        %v369 = vmul.f32 %v330, %v367
        %v372 = vrot.slane %v368, 3
        %v373 = vrot.slane %v369, 3
        %v374 = vsel %vm267, %v372, %v373
        %v376 = vadd.f32 %v363, %v374
        %v377 = vlaneseq
        %v378 = vshrl.u32 %v377, 7
        %v379 = vsub.s32 4, %v378
        %v380 = vrot.slane %v331, %v379
        %v381 = vmul.f32 %v329, %v380
        %v382 = vmul.f32 %v330, %v380
        %v385 = vrot.slane %v381, 4
        %v386 = vrot.slane %v382, 4
        %v387 = vsel %vm281, %v385, %v386
        %v389 = vadd.f32 %v376, %v387
        %v390 = vlaneseq
        %v391 = vshrl.u32 %v390, 7
        %v392 = vsub.s32 5, %v391
        %v393 = vrot.slane %v331, %v392
        %v394 = vmul.f32 %v329, %v393
        %v395 = vmul.f32 %v330, %v393
        %v398 = vrot.slane %v394, 5
        %v399 = vrot.slane %v395, 5
        %v400 = vsel %vm295, %v398, %v399
        %v402 = vadd.f32 %v389, %v400
        %v403 = vlaneseq
        %v404 = vshrl.u32 %v403, 7
        %v405 = vsub.s32 6, %v404
        %v406 = vrot.slane %v331, %v405
        %v407 = vmul.f32 %v329, %v406
        %v408 = vmul.f32 %v330, %v406
        %v411 = vrot.slane %v407, 6
        %v412 = vrot.slane %v408, 6
        %v413 = vsel %vm309, %v411, %v412
        %v415 = vadd.f32 %v402, %v413
        %v416 = vlaneseq
        %v417 = vshrl.u32 %v416, 7
        %v418 = vsub.s32 7, %v417
        %v419 = vrot.slane %v331, %v418
        %v420 = vmul.f32 %v329, %v419
        %v421 = vmul.f32 %v330, %v419
        %v424 = vrot.slane %v420, 7
        %v425 = vrot.slane %v421, 7
        %v426 = vsel %vm323, %v424, %v425
        %v428 = vadd.f32 %v415, %v426
        %429 = vst [vmem:[%s221] sm:$0xff] %v428
        %s430 = sand.u32 %s100, 1
        %s431 = scalar_lea.sflag [#allocation4], %s430
        %s432 = sand.u32 %s100, 1
        %s433 = smul.addr %s432, 8
        %s434 = scalar_lea.vmem [#allocation7], %s433
        // Predicated region
        $region37: #{tpu_custom_call.1} parent=27 // pred_check
          %p435 = pneg %p110
        $region38: #{tpu_custom_call.1} parent=27 // pred_check_branch
          %437 = sbr.rel (%p435) target = $region40
        $region39: #{tpu_custom_call.1} parent=27 // pred_region
          %s439 = ssub.s32 128, 128
          %440 = vsyncadd %s431, %s439
          %s441 = sadd.s32 %s27, %s26
          %s442 = smul.addr %s441, 128
          %s443 = scalar_lea.hbm %s2, %s442
          %s445 = sshll.u32 %s434, 4
          %s446 = int_to_ptr.vmem [resolvable:$true] %s445
          %448 = dma.vmem_to_hbm [thread:$0]  %s446, 128, %s443, %s431
        $region40: #{tpu_custom_call.1} parent=27 // pred_fallthru
          _
      $region28: #{tpu_custom_call.1} parent=5 // pred_fallthru
        _
      %p449 = scmp.le.s32.totalorder 2, %s17
      // Predicated region
      $region41: #{tpu_custom_call.1} parent=5 // pred_check
        %p450 = pneg %p449
      $region42: #{tpu_custom_call.1} parent=5 // pred_check_branch
        %452 = sbr.rel (%p450) target = $region44
      $region43: #{tpu_custom_call.1} parent=5 // pred_region
        %s453 = ssub.s32 %s17, 2
        // Predicated region
        $region45: #{tpu_custom_call.1} parent=43 // pred_check
          %p454 = pneg %p116
        $region46: #{tpu_custom_call.1} parent=43 // pred_check_branch
          %456 = sbr.rel (%p454) target = $region48
        $region47: #{tpu_custom_call.1} parent=43 // pred_region
          %s457 = sand.u32 %s101, 1
          %s458 = scalar_lea.sflag [#allocation4], %s457
          %s459 = sand.u32 %s101, 1
          %s460 = smul.addr %s459, 8
          %s461 = scalar_lea.vmem [#allocation7], %s460
          %462 = dma.done %s458, 128
        $region48: #{tpu_custom_call.1} parent=43 // pred_fallthru
          _
      $region44: #{tpu_custom_call.1} parent=5 // pred_fallthru
        _
    $region6: #{tpu_custom_call.1} parent=1 // loop_footer
      %s21 = sadd.s32 1, %s17
    $region7: #{tpu_custom_call.1} parent=1 // loop_footer_branch
      %16 = sbr.rel target = $region3
    $region8: #{tpu_custom_call.1} parent=1 // loop_exit
      _
    %463 = vsyncpa [#allocation3], 1
    %s464 = scalar_lea.sflag [#allocation3], 1
    %465 = vsyncpa %s464, 1
    %466 = vsyncpa [#allocation6], 1
    %s467 = scalar_lea.sflag [#allocation6], 1
    %468 = vsyncpa %s467, 1
    %469 = vsyncpa [#allocation4], 1
    %s470 = scalar_lea.sflag [#allocation4], 1
    %471 = vsyncpa %s470, 1

</llo_original>
